<compile_context>
chip_gen: v5e
topology: v5e:2x2
jax: 0.10.0
libtpu: 0.0.40
codegen_flags: <defaults>
</compile_context>

<pallas_src>
import functools

import jax
import jax.numpy as jnp
from jax.experimental import pallas as pl
from jax.experimental.pallas import tpu as pltpu


_ROW_ALIGN = 16    # bf16 packs 2 rows per sublane -> row tiles multiple of 16


# ---------------------------------------------------------------------------
# Small helpers
# ---------------------------------------------------------------------------
def _round_up(x, m):
    return (x + m - 1) // m * m


def _choose_tile(n_rows, tile_rows, min_steps=2):
    """Row tile: large (mem-bound → amortize per-step overhead), but capped so
    there are at least `min_steps` grid steps when possible (v7x megacore)."""
    per_step = _round_up(max(1, -(-n_rows // min_steps)), _ROW_ALIGN)
    return max(_ROW_ALIGN, min(tile_rows, per_step))


# ---------------------------------------------------------------------------
# Kernels
# ---------------------------------------------------------------------------
def _edge_mlp_kernel(x_ref, w1_ref, b1_ref, w2_ref, b2_ref, o_ref):
    # f_e: Linear -> ReLU -> Linear. bf16 operands, f32 MXU accumulation.
    h = jnp.dot(x_ref[...], w1_ref[...], preferred_element_type=jnp.float32)
    h = h + b1_ref[...].astype(jnp.float32)
    h = jnp.maximum(h, 0.0)                                   # ReLU
    y = jnp.dot(h.astype(w2_ref.dtype), w2_ref[...],
                preferred_element_type=jnp.float32)
    o_ref[...] = (y + b2_ref[...].astype(jnp.float32)).astype(o_ref.dtype)


def _linear_kernel(x_ref, w_ref, b_ref, o_ref):
    y = jnp.dot(x_ref[...], w_ref[...], preferred_element_type=jnp.float32)
    o_ref[...] = (y + b_ref[...].astype(jnp.float32)).astype(o_ref.dtype)


# ---------------------------------------------------------------------------
# pallas_call wrappers
# ---------------------------------------------------------------------------
_COMPILER_PARAMS = pltpu.CompilerParams(
    dimension_semantics=("parallel",),
    vmem_limit_bytes=48 * 1024 * 1024,  # safe on v5e/v6e (128 MiB) and v7x (64 MiB)
)


def edge_mlp(x, w1, b1, w2, b2, *, tile_rows, out_dtype=jnp.float32):
    """f_e over edges: Linear -> ReLU -> Linear on the fused [E, K] input.

    Output shape is the *logical* (E, out_edge) — no row/column slices needed
    by the caller.
    """
    E, din = x.shape
    hidden = w1.shape[1]
    dout = w2.shape[1]
    if E == 0:
        return jnp.zeros((0, dout), out_dtype)

    tile = _choose_tile(E, tile_rows)
    grid = pl.cdiv(E, tile)

    return pl.pallas_call(
        _edge_mlp_kernel,
        out_shape=jax.ShapeDtypeStruct((E, dout), out_dtype),
        grid_spec=pltpu.PrefetchScalarGridSpec(
            num_scalar_prefetch=0,
            grid=(grid,),
            in_specs=[
                pl.BlockSpec((tile, din), lambda i: (i, 0)),
                # Weights/biases: constant index, tiny, resident across steps.
                pl.BlockSpec((din, hidden), lambda i: (0, 0)),
                pl.BlockSpec((1, hidden), lambda i: (0, 0)),
                pl.BlockSpec((hidden, dout), lambda i: (0, 0)),
                pl.BlockSpec((1, dout), lambda i: (0, 0)),
            ],
            out_specs=pl.BlockSpec((tile, dout), lambda i: (i, 0)),
        ),
        compiler_params=_COMPILER_PARAMS,
    )(x, w1, b1, w2, b2)


def node_linear(x, w, b, *, tile_rows, out_dtype=jnp.float32):
    """f_v over dst nodes: single Linear, logical (N, out_node) output."""
    N, din = x.shape
    dout = w.shape[1]
    if N == 0:
        return jnp.zeros((0, dout), out_dtype)

    tile = _choose_tile(N, tile_rows)
    grid = pl.cdiv(N, tile)

    return pl.pallas_call(
        _linear_kernel,
        out_shape=jax.ShapeDtypeStruct((N, dout), out_dtype),
        grid_spec=pltpu.PrefetchScalarGridSpec(
            num_scalar_prefetch=0,
            grid=(grid,),
            in_specs=[
                pl.BlockSpec((tile, din), lambda i: (i, 0)),
                pl.BlockSpec((din, dout), lambda i: (0, 0)),
                pl.BlockSpec((1, dout), lambda i: (0, 0)),
            ],
            out_specs=pl.BlockSpec((tile, dout), lambda i: (i, 0)),
        ),
        compiler_params=_COMPILER_PARAMS,
    )(x, w, b)


# ---------------------------------------------------------------------------
# Forward (module equivalent)
# ---------------------------------------------------------------------------
@functools.partial(jax.jit, static_argnames=("edge_tile", "node_tile"))
def edge_gn_block_forward(src_feats, dst_feats, edge_feats, src_idx, dst_idx,
                          params, *, edge_tile=2048, node_tile=2048):
    """Equivalent of EdgeGNBlock.forward on a uni-bipartite graph.

    Returns (v2_j, e2) — same order as the PyTorch module.
    """
    compute_dtype = params["w1"].dtype  # bf16

    # Cast to bf16 *before* the gather: node tables are smaller than the
    # gathered [E, d] arrays when E > N, so this halves gather read traffic.
    src_bf = src_feats.astype(compute_dtype)
    dst_bf = dst_feats.astype(compute_dtype)
    e_bf = edge_feats.astype(compute_dtype)

    # graph.apply_edges gather + concat (glue, plain JAX). The gathered
    # per-edge arrays must be materialized anyway, so the fused gather+concat
    # adds no new HBM round trip and lets the kernel run a single K=22 dot.
    # TODO(synk): at production scale, move this gather inside the kernel
    # (bf16 node tables resident in VMEM, per-tile indices via scalar
    # prefetch / SMEM) to avoid materializing the [E, d] arrays entirely.
    x_e = jnp.concatenate(
        [jnp.take(src_bf, src_idx, axis=0),
         e_bf,
         jnp.take(dst_bf, dst_idx, axis=0)], axis=1)

    # --- f_e : Linear -> ReLU -> Linear (Pallas) ---
    e2 = edge_mlp(x_e, params["w1"], params["b1"], params["w2"], params["b2"],
                  tile_rows=edge_tile, out_dtype=jnp.float32)

    # --- f_v : Linear on dst node feats (Pallas) ---
    v2_j = node_linear(dst_bf, params["wv"], params["bv"],
                       tile_rows=node_tile, out_dtype=jnp.float32)
    return v2_j, e2


# ---------------------------------------------------------------------------
# Parameters
# ---------------------------------------------------------------------------
def init_params(key, in_src, in_edge, in_dst, hidden, out_node, out_edge,
                dtype=jnp.float32):
    """Raw (unpadded, [in, out]) parameters matching EdgeGNBlock.__init__."""
    din = in_src + in_edge + in_dst
    ks = jax.random.split(key, 6)
    scale = 0.1
    return {
        "w1": scale * jax.random.normal(ks[0], (din, hidden), dtype),
        "b1": scale * jax.random.normal(ks[1], (hidden,), dtype),
        "w2": scale * jax.random.normal(ks[2], (hidden, out_edge), dtype),
        "b2": scale * jax.random.normal(ks[3], (out_edge,), dtype),
        "wv": scale * jax.random.normal(ks[4], (in_dst, out_node), dtype),
        "bv": scale * jax.random.normal(ks[5], (out_node,), dtype),
    }


def prepare_kernel_params(raw, compute_dtype=jnp.bfloat16):
    """Cast to bf16 and make biases 2-D [1, out]. No feature-dim padding:
    the kernel is memory-bound, so extra padded bytes only cost bandwidth."""
    return {
        "w1": raw["w1"].astype(compute_dtype),
        "b1": raw["b1"].reshape(1, -1).astype(compute_dtype),
        "w2": raw["w2"].astype(compute_dtype),
        "b2": raw["b2"].reshape(1, -1).astype(compute_dtype),
        "wv": raw["wv"].astype(compute_dtype),
        "bv": raw["bv"].reshape(1, -1).astype(compute_dtype),
    }


# ---------------------------------------------------------------------------
# Main
# ---------------------------------------------------------------------------
if __name__ == "__main__":
    # Small, module-consistent shapes.
    IN_SRC, IN_EDGE, IN_DST = 8, 6, 8
    HIDDEN, OUT_NODE, OUT_EDGE = 32, 16, 24
    NUM_SRC, NUM_DST, NUM_EDGES = 16, 16, 32

    key = jax.random.PRNGKey(0)
    kp, ks, kd, ke, ki, kj = jax.random.split(key, 6)

    raw = init_params(kp, IN_SRC, IN_EDGE, IN_DST, HIDDEN, OUT_NODE, OUT_EDGE)
    params = prepare_kernel_params(raw)

    src_feats = jax.random.normal(ks, (NUM_SRC, IN_SRC), jnp.float32)
    dst_feats = jax.random.normal(kd, (NUM_DST, IN_DST), jnp.float32)
    edge_feats = jax.random.normal(ke, (NUM_EDGES, IN_EDGE), jnp.float32)
    src_idx = jax.random.randint(ki, (NUM_EDGES,), 0, NUM_SRC, dtype=jnp.int32)
    dst_idx = jax.random.randint(kj, (NUM_EDGES,), 0, NUM_DST, dtype=jnp.int32)

    v2_j, e2 = edge_gn_block_forward(
        src_feats, dst_feats, edge_feats, src_idx, dst_idx, params)
    jax.block_until_ready((v2_j, e2))

    # Plain-JAX reference with matching bf16 rounding of operands
    # (f32 accumulation), mirroring the kernel's numerics.
    f32 = jnp.float32
    bf = lambda a: a.astype(jnp.bfloat16).astype(f32)
    x_ref = jnp.concatenate(
        [bf(src_feats)[src_idx], bf(edge_feats), bf(dst_feats)[dst_idx]], axis=1)
    h_ref = jnp.maximum(x_ref @ bf(raw["w1"]) + bf(raw["b1"]), 0.0)
    e2_ref = bf(h_ref) @ bf(raw["w2"]) + bf(raw["b2"])
    v2_ref = bf(dst_feats) @ bf(raw["wv"]) + bf(raw["bv"])

    assert v2_j.shape == (NUM_DST, OUT_NODE), v2_j.shape
    assert e2.shape == (NUM_EDGES, OUT_EDGE), e2.shape
    assert jnp.allclose(e2, e2_ref, atol=1e-2, rtol=1e-2), "e2 mismatch"
    assert jnp.allclose(v2_j, v2_ref, atol=1e-2, rtol=1e-2), "v2_j mismatch"

    print("KERNEL_OK")
</pallas_src>

<mosaic_0001>
module attributes {stable_mosaic.version = 11 : i64} {
  func.func @_edge_mlp_kernel(%arg0: i32, %arg1: memref<16x22xbf16, #tpu.memory_space<vmem>>, %arg2: memref<22x32xbf16, #tpu.memory_space<vmem>>, %arg3: memref<1x32xbf16, #tpu.memory_space<vmem>>, %arg4: memref<32x24xbf16, #tpu.memory_space<vmem>>, %arg5: memref<1x24xbf16, #tpu.memory_space<vmem>>, %arg6: memref<16x24xf32, #tpu.memory_space<vmem>>) attributes {dimension_semantics = [#tpu.dimension_semantics<parallel>], iteration_bounds = array<i64: 2>, scalar_prefetch = 0 : i64, scratch_operands = 0 : i64, tpu.core_type = #tpu.core_type<tc>, window_params = [{transform_indices = @transform_0, window_bounds = array<i64: 16, 22>}, {pipeline_mode = #tpu.pipeline_mode<synchronous>, transform_indices = @transform_1, window_bounds = array<i64: 22, 32>}, {pipeline_mode = #tpu.pipeline_mode<synchronous>, transform_indices = @transform_2, window_bounds = array<i64: 1, 32>}, {pipeline_mode = #tpu.pipeline_mode<synchronous>, transform_indices = @transform_3, window_bounds = array<i64: 32, 24>}, {pipeline_mode = #tpu.pipeline_mode<synchronous>, transform_indices = @transform_4, window_bounds = array<i64: 1, 24>}, {transform_indices = @transform_5, window_bounds = array<i64: 16, 24>}]} {
    %c0 = arith.constant 0 : index
    %c0_0 = arith.constant 0 : index
    %0 = vector.load %arg1[%c0, %c0_0] : memref<16x22xbf16, #tpu.memory_space<vmem>>, vector<16x22xbf16>
    %c0_1 = arith.constant 0 : index
    %c0_2 = arith.constant 0 : index
    %1 = vector.load %arg2[%c0_1, %c0_2] : memref<22x32xbf16, #tpu.memory_space<vmem>>, vector<22x32xbf16>
    %cst = arith.constant dense<0.000000e+00> : vector<16x32xf32>
    %2 = tpu.matmul %0, %1, %cst {dimension_numbers = #tpu.dot_dimension_numbers<[1], [0], [0], [1], [0, 0, 1, 1], [], []>} : vector<16x22xbf16>, vector<22x32xbf16>, vector<16x32xf32> -> vector<16x32xf32>
    %c0_3 = arith.constant 0 : index
    %c0_4 = arith.constant 0 : index
    %3 = vector.load %arg3[%c0_3, %c0_4] : memref<1x32xbf16, #tpu.memory_space<vmem>>, vector<1x32xbf16>
    %4 = arith.extf %3 : vector<1x32xbf16> to vector<1x32xf32>
    %5 = vector.broadcast %4 : vector<1x32xf32> to vector<16x32xf32>
    %6 = arith.addf %2, %5 : vector<16x32xf32>
    %cst_5 = arith.constant 0.000000e+00 : f32
    %7 = vector.broadcast %cst_5 : f32 to vector<16x32xf32>
    %8 = arith.maximumf %6, %7 : vector<16x32xf32>
    %9 = arith.truncf %8 : vector<16x32xf32> to vector<16x32xbf16>
    %c0_6 = arith.constant 0 : index
    %c0_7 = arith.constant 0 : index
    %10 = vector.load %arg4[%c0_6, %c0_7] : memref<32x24xbf16, #tpu.memory_space<vmem>>, vector<32x24xbf16>
    %cst_8 = arith.constant dense<0.000000e+00> : vector<16x24xf32>
    %11 = tpu.matmul %9, %10, %cst_8 {dimension_numbers = #tpu.dot_dimension_numbers<[1], [0], [0], [1], [0, 0, 1, 1], [], []>} : vector<16x32xbf16>, vector<32x24xbf16>, vector<16x24xf32> -> vector<16x24xf32>
    %c0_9 = arith.constant 0 : index
    %c0_10 = arith.constant 0 : index
    %12 = vector.load %arg5[%c0_9, %c0_10] : memref<1x24xbf16, #tpu.memory_space<vmem>>, vector<1x24xbf16>
    %13 = arith.extf %12 : vector<1x24xbf16> to vector<1x24xf32>
    %14 = vector.broadcast %13 : vector<1x24xf32> to vector<16x24xf32>
    %15 = arith.addf %11, %14 : vector<16x24xf32>
    %c0_11 = arith.constant 0 : index
    %c0_12 = arith.constant 0 : index
    %16 = vector.load %arg6[%c0_11, %c0_12] : memref<16x24xf32, #tpu.memory_space<vmem>>, vector<16x24xf32>
    tpu.vector_store %arg6[%c0_11, %c0_12], %15 {strides = array<i32>} : memref<16x24xf32, #tpu.memory_space<vmem>>, vector<16x24xf32>,
    return
  }
  func.func @transform_0(%arg0: i32) -> (i32, i32) {
    %c0_i32 = arith.constant 0 : i32
    %c0_i32_0 = arith.constant 0 : i32
    return %arg0, %c0_i32 : i32, i32
  }
  func.func @transform_1(%arg0: i32) -> (i32, i32) {
    %c0_i32 = arith.constant 0 : i32
    %c0_i32_0 = arith.constant 0 : i32
    %c0_i32_1 = arith.constant 0 : i32
    return %c0_i32, %c0_i32_0 : i32, i32
  }
  func.func @transform_2(%arg0: i32) -> (i32, i32) {
    %c0_i32 = arith.constant 0 : i32
    %c0_i32_0 = arith.constant 0 : i32
    %c0_i32_1 = arith.constant 0 : i32
    return %c0_i32, %c0_i32_0 : i32, i32
  }
  func.func @transform_3(%arg0: i32) -> (i32, i32) {
    %c0_i32 = arith.constant 0 : i32
    %c0_i32_0 = arith.constant 0 : i32
    %c0_i32_1 = arith.constant 0 : i32
    return %c0_i32, %c0_i32_0 : i32, i32
  }
  func.func @transform_4(%arg0: i32) -> (i32, i32) {
    %c0_i32 = arith.constant 0 : i32
    %c0_i32_0 = arith.constant 0 : i32
    %c0_i32_1 = arith.constant 0 : i32
    return %c0_i32, %c0_i32_0 : i32, i32
  }
  func.func @transform_5(%arg0: i32) -> (i32, i32) {
    %c0_i32 = arith.constant 0 : i32
    %c0_i32_0 = arith.constant 0 : i32
    return %arg0, %c0_i32 : i32, i32
  }
}

module attributes {stable_mosaic.version = 11 : i64} {
  func.func @_linear_kernel(%arg0: i32, %arg1: memref<16x8xbf16, #tpu.memory_space<vmem>>, %arg2: memref<8x16xbf16, #tpu.memory_space<vmem>>, %arg3: memref<1x16xbf16, #tpu.memory_space<vmem>>, %arg4: memref<16x16xf32, #tpu.memory_space<vmem>>) attributes {dimension_semantics = [#tpu.dimension_semantics<parallel>], iteration_bounds = array<i64: 1>, scalar_prefetch = 0 : i64, scratch_operands = 0 : i64, tpu.core_type = #tpu.core_type<tc>, window_params = [{transform_indices = @transform_0, window_bounds = array<i64: 16, 8>}, {pipeline_mode = #tpu.pipeline_mode<synchronous>, transform_indices = @transform_1, window_bounds = array<i64: 8, 16>}, {pipeline_mode = #tpu.pipeline_mode<synchronous>, transform_indices = @transform_2, window_bounds = array<i64: 1, 16>}, {transform_indices = @transform_3, window_bounds = array<i64: 16, 16>}]} {
    %c0 = arith.constant 0 : index
    %c0_0 = arith.constant 0 : index
    %0 = vector.load %arg1[%c0, %c0_0] : memref<16x8xbf16, #tpu.memory_space<vmem>>, vector<16x8xbf16>
    %c0_1 = arith.constant 0 : index
    %c0_2 = arith.constant 0 : index
    %1 = vector.load %arg2[%c0_1, %c0_2] : memref<8x16xbf16, #tpu.memory_space<vmem>>, vector<8x16xbf16>
    %cst = arith.constant dense<0.000000e+00> : vector<16x16xf32>
    %2 = tpu.matmul %0, %1, %cst {dimension_numbers = #tpu.dot_dimension_numbers<[1], [0], [0], [1], [0, 0, 1, 1], [], []>} : vector<16x8xbf16>, vector<8x16xbf16>, vector<16x16xf32> -> vector<16x16xf32>
    %c0_3 = arith.constant 0 : index
    %c0_4 = arith.constant 0 : index
    %3 = vector.load %arg3[%c0_3, %c0_4] : memref<1x16xbf16, #tpu.memory_space<vmem>>, vector<1x16xbf16>
    %4 = arith.extf %3 : vector<1x16xbf16> to vector<1x16xf32>
    %5 = vector.broadcast %4 : vector<1x16xf32> to vector<16x16xf32>
    %6 = arith.addf %2, %5 : vector<16x16xf32>
    %c0_5 = arith.constant 0 : index
    %c0_6 = arith.constant 0 : index
    %7 = vector.load %arg4[%c0_5, %c0_6] : memref<16x16xf32, #tpu.memory_space<vmem>>, vector<16x16xf32>
    tpu.vector_store %arg4[%c0_5, %c0_6], %6 {strides = array<i32>} : memref<16x16xf32, #tpu.memory_space<vmem>>, vector<16x16xf32>,
    return
  }
  func.func @transform_0(%arg0: i32) -> (i32, i32) {
    %c0_i32 = arith.constant 0 : i32
    %c0_i32_0 = arith.constant 0 : i32
    return %arg0, %c0_i32 : i32, i32
  }
  func.func @transform_1(%arg0: i32) -> (i32, i32) {
    %c0_i32 = arith.constant 0 : i32
    %c0_i32_0 = arith.constant 0 : i32
    %c0_i32_1 = arith.constant 0 : i32
    return %c0_i32, %c0_i32_0 : i32, i32
  }
  func.func @transform_2(%arg0: i32) -> (i32, i32) {
    %c0_i32 = arith.constant 0 : i32
    %c0_i32_0 = arith.constant 0 : i32
    %c0_i32_1 = arith.constant 0 : i32
    return %c0_i32, %c0_i32_0 : i32, i32
  }
  func.func @transform_3(%arg0: i32) -> (i32, i32) {
    %c0_i32 = arith.constant 0 : i32
    %c0_i32_0 = arith.constant 0 : i32
    return %arg0, %c0_i32 : i32, i32
  }
}

</mosaic_0001>

<llo_original>
// kernel: edge_gn_block_forward.2
$region0: #{edge_gn_block_forward.2}
  #allocation0 [shape = 'u32[]', space=smem, size = 0x4, offset = 0x4, fixed_abs, tag = 'smem constant byte address 0x4 - core index']
  #allocation1 [shape = 'u32[72,128]{1,0:T(1,128)}', space=vmem, size = 0x9000, scoped, tag = 'internal scratch']
  %s0 = inlined_call_operand.vmem [shape: bf16[32,22], index: 0, kind: input, shape index: {}]
  %s1 = inlined_call_operand.vmem [shape: bf16[22,32], index: 1, kind: input, shape index: {}]
  %s2 = inlined_call_operand.vmem [shape: bf16[1,32], index: 2, kind: input, shape index: {}]
  %s3 = inlined_call_operand.vmem [shape: bf16[32,24], index: 3, kind: input, shape index: {}]
  %s4 = inlined_call_operand.vmem [shape: bf16[1,24], index: 4, kind: input, shape index: {}]
  %s5 = inlined_call_operand.vmem [shape: f32[32,24], index: 5, kind: output, shape index: {}]
  %s6 = sld [smem:[#allocation0]]
  $region53: #{edge_gn_block_forward.2} parent=0
    _
  %s8 = ssub.s32 1, %s6
  %s9 = scalar_select 0, %s8, %s6
  loop: start=0, step=1, limit=4
  $region2: #{edge_gn_block_forward.2} parent=0 // loop_pre_header
    _
  $region3: #{edge_gn_block_forward.2} parent=0 // loop_header
    %s11 = sphi 0, %s15
    %p12 = scmp.ge.s32.totalorder %s11, 4
    %s21 = sphi 0, %s23
    %s24 = sphi 0, %s21
    %s25 = sphi 0, %s24
    %s41 = sphi 0, %s25
    %s45 = sphi 0, %s45
    %s47 = sphi 0, %s45
    %s48 = sphi 0, %s47
    %s62 = sphi 0, %s48
    %s66 = sphi 0, %s66
    %s68 = sphi 0, %s66
    %s69 = sphi 0, %s68
    %s83 = sphi 0, %s69
    %s87 = sphi 0, %s87
    %s89 = sphi 0, %s87
    %s90 = sphi 0, %s89
    %s104 = sphi 0, %s90
    %s108 = sphi 0, %s108
    %s110 = sphi 0, %s108
    %s111 = sphi 0, %s110
    %s125 = sphi 0, %s111
    %s131 = sphi 0, %s133
    %s134 = sphi 0, %s131
    %s135 = sphi 0, %s134
    %s151 = sphi 0, %s135
  $region4: #{edge_gn_block_forward.2} parent=0 // loop_header_branch
    %14 = sbr.rel (%p12) target = $region8
  $region5: #{edge_gn_block_forward.2} parent=0 // loop_body
    %s16 = ssub.s32 %s11, 1
    %s17 = ssub.s32 %s11, 2
    %s18 = sadd.s32 %s11, 1
    %s19 = ssub.s32 %s11, %s18
    %p20 = scmp.eq.s32.totalorder %s19, 0
    %s22 = sadd.s32 %s21, 1
    %s23 = scalar_select %p20, %s21, %s22
    %p26 = pneg %p20
    %p27 = scmp.eq.s32.totalorder %s11, 1
    %p28 = por %p26, %p27
    %p29 = scmp.ne.s32.totalorder %s21, %s24
    %p30 = scmp.eq.s32.totalorder %s11, 0
    %p31 = por %p29, %p30
    %p32 = scmp.ne.s32.totalorder %s21, %s24
    %p33 = scmp.eq.s32.totalorder %s16, 1
    %p34 = por %p32, %p33
    %p35 = scmp.ne.s32.totalorder %s24, %s25
    %p36 = scmp.eq.s32.totalorder %s16, 0
    %p37 = por %p35, %p36
    %p38 = scmp.ne.s32.totalorder %s24, %s25
    %p39 = scmp.eq.s32.totalorder %s17, 1
    %p40 = por %p38, %p39
    %p42 = scmp.ne.s32.totalorder %s25, %s41
    %p43 = scmp.eq.s32.totalorder %s17, 0
    %p44 = por %p42, %p43
    %s46 = sadd.s32 %s45, 1
    %p49 = scmp.eq.s32.totalorder %s11, 1
    %p50 = scmp.ne.s32.totalorder %s45, %s47
    %p51 = scmp.eq.s32.totalorder %s11, 0
    %p52 = por %p50, %p51
    %p53 = scmp.ne.s32.totalorder %s45, %s47
    %p54 = scmp.eq.s32.totalorder %s16, 1
    %p55 = por %p53, %p54
    %p56 = scmp.ne.s32.totalorder %s47, %s48
    %p57 = scmp.eq.s32.totalorder %s16, 0
    %p58 = por %p56, %p57
    %p59 = scmp.ne.s32.totalorder %s47, %s48
    %p60 = scmp.eq.s32.totalorder %s17, 1
    %p61 = por %p59, %p60
    %p63 = scmp.ne.s32.totalorder %s48, %s62
    %p64 = scmp.eq.s32.totalorder %s17, 0
    %p65 = por %p63, %p64
    %s67 = sadd.s32 %s66, 1
    %p70 = scmp.eq.s32.totalorder %s11, 1
    %p71 = scmp.ne.s32.totalorder %s66, %s68
    %p72 = scmp.eq.s32.totalorder %s11, 0
    %p73 = por %p71, %p72
    %p74 = scmp.ne.s32.totalorder %s66, %s68
    %p75 = scmp.eq.s32.totalorder %s16, 1
    %p76 = por %p74, %p75
    %p77 = scmp.ne.s32.totalorder %s68, %s69
    %p78 = scmp.eq.s32.totalorder %s16, 0
    %p79 = por %p77, %p78
    %p80 = scmp.ne.s32.totalorder %s68, %s69
    %p81 = scmp.eq.s32.totalorder %s17, 1
    %p82 = por %p80, %p81
    %p84 = scmp.ne.s32.totalorder %s69, %s83
    %p85 = scmp.eq.s32.totalorder %s17, 0
    %p86 = por %p84, %p85
    %s88 = sadd.s32 %s87, 1
    %p91 = scmp.eq.s32.totalorder %s11, 1
    %p92 = scmp.ne.s32.totalorder %s87, %s89
    %p93 = scmp.eq.s32.totalorder %s11, 0
    %p94 = por %p92, %p93
    %p95 = scmp.ne.s32.totalorder %s87, %s89
    %p96 = scmp.eq.s32.totalorder %s16, 1
    %p97 = por %p95, %p96
    %p98 = scmp.ne.s32.totalorder %s89, %s90
    %p99 = scmp.eq.s32.totalorder %s16, 0
    %p100 = por %p98, %p99
    %p101 = scmp.ne.s32.totalorder %s89, %s90
    %p102 = scmp.eq.s32.totalorder %s17, 1
    %p103 = por %p101, %p102
    %p105 = scmp.ne.s32.totalorder %s90, %s104
    %p106 = scmp.eq.s32.totalorder %s17, 0
    %p107 = por %p105, %p106
    %s109 = sadd.s32 %s108, 1
    %p112 = scmp.eq.s32.totalorder %s11, 1
    %p113 = scmp.ne.s32.totalorder %s108, %s110
    %p114 = scmp.eq.s32.totalorder %s11, 0
    %p115 = por %p113, %p114
    %p116 = scmp.ne.s32.totalorder %s108, %s110
    %p117 = scmp.eq.s32.totalorder %s16, 1
    %p118 = por %p116, %p117
    %p119 = scmp.ne.s32.totalorder %s110, %s111
    %p120 = scmp.eq.s32.totalorder %s16, 0
    %p121 = por %p119, %p120
    %p122 = scmp.ne.s32.totalorder %s110, %s111
    %p123 = scmp.eq.s32.totalorder %s17, 1
    %p124 = por %p122, %p123
    %p126 = scmp.ne.s32.totalorder %s111, %s125
    %p127 = scmp.eq.s32.totalorder %s17, 0
    %p128 = por %p126, %p127
    %s129 = ssub.s32 %s11, %s18
    %p130 = scmp.eq.s32.totalorder %s129, 0
    %s132 = sadd.s32 %s131, 1
    %s133 = scalar_select %p130, %s131, %s132
    %p136 = pneg %p130
    %p137 = scmp.eq.s32.totalorder %s11, 1
    %p138 = por %p136, %p137
    %p139 = scmp.ne.s32.totalorder %s131, %s134
    %p140 = scmp.eq.s32.totalorder %s11, 0
    %p141 = por %p139, %p140
    %p142 = scmp.ne.s32.totalorder %s131, %s134
    %p143 = scmp.eq.s32.totalorder %s16, 1
    %p144 = por %p142, %p143
    %p145 = scmp.ne.s32.totalorder %s134, %s135
    %p146 = scmp.eq.s32.totalorder %s16, 0
    %p147 = por %p145, %p146
    %p148 = scmp.ne.s32.totalorder %s134, %s135
    %p149 = scmp.eq.s32.totalorder %s17, 1
    %p150 = por %p148, %p149
    %p152 = scmp.ne.s32.totalorder %s135, %s151
    %p153 = scmp.eq.s32.totalorder %s17, 0
    %p154 = por %p152, %p153
    %p155 = scmp.le.s32.totalorder 1, %s11
    %p156 = scmp.lt.s32.totalorder %s11, 3
    %p157 = pnand %p155, %p156
    %p158 = pneg %p157
    // Predicated region
    $region9: #{edge_gn_block_forward.2} parent=5 // pred_check
      _
    $region10: #{edge_gn_block_forward.2} parent=5 // pred_check_branch
      %160 = sbr.rel (%p157) target = $region12
    $region11: #{edge_gn_block_forward.2} parent=5 // pred_region
      %s161 = ssub.s32 %s11, 1
      // Predicated region
      $region13: #{edge_gn_block_forward.2} parent=11 // pred_check
        %p162 = pneg %p58
      $region14: #{edge_gn_block_forward.2} parent=11 // pred_check_branch
        %164 = sbr.rel (%p162) target = $region16
      $region15: #{edge_gn_block_forward.2} parent=11 // pred_region
        _
      $region16: #{edge_gn_block_forward.2} parent=11 // pred_fallthru
        _
      // Predicated region
      $region17: #{edge_gn_block_forward.2} parent=11 // pred_check
        %p165 = pneg %p79
      $region18: #{edge_gn_block_forward.2} parent=11 // pred_check_branch
        %167 = sbr.rel (%p165) target = $region20
      $region19: #{edge_gn_block_forward.2} parent=11 // pred_region
        _
      $region20: #{edge_gn_block_forward.2} parent=11 // pred_fallthru
        _
      // Predicated region
      $region21: #{edge_gn_block_forward.2} parent=11 // pred_check
        %p168 = pneg %p100
      $region22: #{edge_gn_block_forward.2} parent=11 // pred_check_branch
        %170 = sbr.rel (%p168) target = $region24
      $region23: #{edge_gn_block_forward.2} parent=11 // pred_region
        _
      $region24: #{edge_gn_block_forward.2} parent=11 // pred_fallthru
        _
      // Predicated region
      $region25: #{edge_gn_block_forward.2} parent=11 // pred_check
        %p171 = pneg %p121
      $region26: #{edge_gn_block_forward.2} parent=11 // pred_check_branch
        %173 = sbr.rel (%p171) target = $region28
      $region27: #{edge_gn_block_forward.2} parent=11 // pred_region
        _
      $region28: #{edge_gn_block_forward.2} parent=11 // pred_fallthru
        _
    $region12: #{edge_gn_block_forward.2} parent=5 // pred_fallthru
      _
    %p174 = scmp.lt.s32.totalorder %s11, 2
    // Predicated region
    $region29: #{edge_gn_block_forward.2} parent=5 // pred_check
      %p175 = pneg %p174
    $region30: #{edge_gn_block_forward.2} parent=5 // pred_check_branch
      %177 = sbr.rel (%p175) target = $region32
    $region31: #{edge_gn_block_forward.2} parent=5 // pred_region
      // Predicated region
      $region33: #{edge_gn_block_forward.2} parent=31 // pred_check
        %p178 = pneg %p31
      $region34: #{edge_gn_block_forward.2} parent=31 // pred_check_branch
        %180 = sbr.rel (%p178) target = $region36
      $region35: #{edge_gn_block_forward.2} parent=31 // pred_region
        %s181 = smul.u32 2, %s11
        %p182 = scmp.lt.s32.totalorder %s181, 3
        %s183 = scalar_select %p182, %s181, 3
        %s184 = smul.addr %s183, 4
        %s185 = scalar_lea.vmem %s0, %s184
        %s186 = smul.u32 2, %s11
      $region36: #{edge_gn_block_forward.2} parent=31 // pred_fallthru
        _
    $region32: #{edge_gn_block_forward.2} parent=5 // pred_fallthru
      _
    %p187 = scmp.le.s32.totalorder 1, %s11
    %p188 = scmp.lt.s32.totalorder %s11, 3
    %p189 = pnand %p187, %p188
    %p190 = pneg %p189
    // Predicated region
    $region37: #{edge_gn_block_forward.2} parent=5 // pred_check
      _
    $region38: #{edge_gn_block_forward.2} parent=5 // pred_check_branch
      %192 = sbr.rel (%p189) target = $region40
    $region39: #{edge_gn_block_forward.2} parent=5 // pred_region
      %s193 = ssub.s32 %s11, 1
      %s194 = smul.u32 2, %s16
      %p195 = scmp.lt.s32.totalorder %s194, 3
      %s196 = scalar_select %p195, %s194, 3
      %s197 = smul.addr %s196, 4
      %s198 = scalar_lea.vmem %s0, %s197
      %p199 = pneg %p37
      %p200 = pneg %p34
      %p201 = pneg %p58
      %p202 = pneg %p55
      %p203 = pneg %p79
      %p204 = pneg %p76
      %p205 = pneg %p100
      %p206 = pneg %p97
      %p207 = pneg %p121
      %p208 = pneg %p118
      %p209 = pneg %p147
      %p210 = pneg %p144
      %s211 = smul.u32 2, %s16
      %p212 = scmp.lt.s32.totalorder %s211, 3
      %s213 = scalar_select %p212, %s211, 3
      %s214 = smul.addr %s213, 8
      %s215 = scalar_lea.vmem %s5, %s214
      %s216 = smul.u32 2, %s16
      %p217 = scmp.lt.s32.totalorder %s216, 3
      %s218 = scalar_select %p217, %s216, 3
      %s219 = smul.addr %s218, 4
      %s220 = scalar_lea.vmem %s0, %s219
      %s221 = smul.u32 2, %s16
      %s222 = smul.u32 2, %s16
      %p223 = scmp.lt.s32.totalorder %s222, 3
      %s224 = scalar_select %p223, %s222, 3
      %s225 = smul.addr %s224, 8
      %s226 = scalar_lea.vmem %s5, %s225
      %s227 = smul.u32 2, %s16
      %v229 = vld [vmem:[%s220] sm:$0xf]
      %v230 = vld [vmem:[%s220 + $0x4] sm:$0xf]
      %v231 = vld [vmem:[%s1] sm:$0xf]
      %v232 = vld [vmem:[%s1 + $0x4] sm:$0xf]
      %v233 = vld [vmem:[%s1 + $0x8] sm:$0x7]
      %v234 = vld [vmem:[%s2] sm:$0x1]
      %v235 = vunpack.c.l.bf16 %v234
      %v236 = vperm.slane %v235, 0
      %v239 = vunpack.c.l.b16 %v229
      %v240 = vunpack.c.l.b16 %v230
      %v241 = vpack.c.b16 %v240, %v239
      %v245 = vunpack.c.l.b16 %v231
      %v246 = vunpack.c.l.b16 %v232
      %v247 = vunpack.c.l.b16 %v233
      %v248 = vpack.c.b16 %v246, %v245
      %v249 = vpack.c.b16 %v247, %v247
      %vm251 = vcmask 179200
      %v253 = vsel %vm251, %v241, 0
      %vm255 = vcmask 1042432
      %v257 = vsel %vm255, %v249, 0
      %259 = vmatpush.bf16.msra.mxu0 0
      %260 = vmatpush.bf16.msra.mxu0 0
      %261 = vmatpush.bf16.msra.mxu0 0
      %262 = vmatpush.bf16.msra.mxu0 0
      %263 = vmatpush.bf16.msra.mxu0 0
      %264 = vmatpush.bf16.msra.mxu0 0
      %265 = vmatpush.bf16.msra.mxu0 %v257
      %266 = vmatpush.bf16.msra.mxu0 %v248
      %267 = vmatmul.bf16.gmra.mxu0 %v253
      %v268 = vpop.f32.mrf.mxu0
      %v269 = vadd.f32 %v236, %v268
      %v270 = vpop.f32.mrf.mxu0
      %v271 = vadd.f32 %v236, %v270
      %272 = vdwg.mxu0
      %v273 = vmax.f32 %v269, 0.0
      %v274 = vmax.f32 %v271, 0.0
      %v275 = vpack.c.bf16 %v274, %v273
      %v276 = vld [vmem:[%s3] sm:$0xf]
      %v277 = vld [vmem:[%s3 + $0x4] sm:$0xf]
      %v278 = vld [vmem:[%s3 + $0x8] sm:$0xf]
      %v279 = vld [vmem:[%s3 + $0xc] sm:$0xf]
      %v280 = vld [vmem:[%s4] sm:$0x1]
      %v281 = vunpack.c.l.bf16 %v280
      %v282 = vperm.slane %v281, 0
      %v287 = vunpack.c.l.b16 %v276
      %v288 = vunpack.c.l.b16 %v277
      %v289 = vunpack.c.l.b16 %v278
      %v290 = vunpack.c.l.b16 %v279
      %v291 = vpack.c.b16 %v288, %v287
      %v292 = vpack.c.b16 %v290, %v289
      %vm295 = vcmask 261120
      %v297 = vsel %vm295, %v275, 0
      %299 = vmatpush.bf16.msra.mxu0 0
      %300 = vmatpush.bf16.msra.mxu0 0
      %301 = vmatpush.bf16.msra.mxu0 0
      %302 = vmatpush.bf16.msra.mxu0 0
      %303 = vmatpush.bf16.msra.mxu0 0
      %304 = vmatpush.bf16.msra.mxu0 0
      %305 = vmatpush.bf16.msra.mxu0 %v292
      %306 = vmatpush.bf16.msra.mxu0 %v291
      %307 = vmatmul.bf16.gmra.mxu0 %v297
      %v308 = vpop.f32.mrf.mxu0
      %v309 = vadd.f32 %v282, %v308
      %v310 = vpop.f32.mrf.mxu0
      %v311 = vadd.f32 %v282, %v310
      %312 = vdwg.mxu0
      %vm313 = vcmask 195584
      %314 = vst.msk [vmem:[%s226] sm:$0xff] %vm313, %v309
      %315 = vst.msk [vmem:[%s226 + $0x8] sm:$0xff] %vm313, %v311
      %s316 = smul.u32 2, %s16
      %p317 = scmp.lt.s32.totalorder %s316, 3
      %s318 = scalar_select %p317, %s316, 3
      %s319 = smul.addr %s318, 8
      %s320 = scalar_lea.vmem %s5, %s319
      // Predicated region
      $region41: #{edge_gn_block_forward.2} parent=39 // pred_check
        %p321 = pneg %p144
      $region42: #{edge_gn_block_forward.2} parent=39 // pred_check_branch
        %323 = sbr.rel (%p321) target = $region44
      $region43: #{edge_gn_block_forward.2} parent=39 // pred_region
        %s324 = smul.u32 2, %s16
      $region44: #{edge_gn_block_forward.2} parent=39 // pred_fallthru
        _
    $region40: #{edge_gn_block_forward.2} parent=5 // pred_fallthru
      _
    %p325 = scmp.le.s32.totalorder 2, %s11
    // Predicated region
    $region45: #{edge_gn_block_forward.2} parent=5 // pred_check
      %p326 = pneg %p325
    $region46: #{edge_gn_block_forward.2} parent=5 // pred_check_branch
      %328 = sbr.rel (%p326) target = $region48
    $region47: #{edge_gn_block_forward.2} parent=5 // pred_region
      %s329 = ssub.s32 %s11, 2
      // Predicated region
      $region49: #{edge_gn_block_forward.2} parent=47 // pred_check
        %p330 = pneg %p150
      $region50: #{edge_gn_block_forward.2} parent=47 // pred_check_branch
        %332 = sbr.rel (%p330) target = $region52
      $region51: #{edge_gn_block_forward.2} parent=47 // pred_region
        %s333 = smul.u32 2, %s17
        %p334 = scmp.lt.s32.totalorder %s333, 3
        %s335 = scalar_select %p334, %s333, 3
        %s336 = smul.addr %s335, 8
        %s337 = scalar_lea.vmem %s5, %s336
      $region52: #{edge_gn_block_forward.2} parent=47 // pred_fallthru
        _
    $region48: #{edge_gn_block_forward.2} parent=5 // pred_fallthru
      _
  $region6: #{edge_gn_block_forward.2} parent=0 // loop_footer
    %s15 = sadd.s32 1, %s11
  $region7: #{edge_gn_block_forward.2} parent=0 // loop_footer_branch
    %10 = sbr.rel target = $region3
  $region8: #{edge_gn_block_forward.2} parent=0 // loop_exit
    _

// kernel: edge_gn_block_forward.3
$region0: #{edge_gn_block_forward.3}
  #allocation0 [shape = 'u32[]', space=smem, size = 0x4, offset = 0x4, fixed_abs, tag = 'smem constant byte address 0x4 - core index']
  #allocation1 [shape = 'u32[72,128]{1,0:T(1,128)}', space=vmem, size = 0x9000, scoped, tag = 'internal scratch']
  %s0 = inlined_call_operand.vmem [shape: bf16[16,8], index: 0, kind: input, shape index: {}]
  %s1 = inlined_call_operand.vmem [shape: bf16[8,16], index: 1, kind: input, shape index: {}]
  %s2 = inlined_call_operand.vmem [shape: bf16[1,16], index: 2, kind: input, shape index: {}]
  %s3 = inlined_call_operand.hbm [shape: f32[16,16], index: 3, kind: output, shape index: {}]
  %s4 = sld [smem:[#allocation0]]
  $region22: #{edge_gn_block_forward.3} parent=0
    _
  %s6 = ssub.s32 1, %s4
  %s7 = scalar_select 0, %s6, %s4
  $region1: #{edge_gn_block_forward.3} parent=0
    #allocation2 [shape = 'u8[8192]{0}', space=vmem, size = 0x2000, scoped, tag = 'output window, operand 0, single buffered']
    #allocation3 [shape = 's32[1]{0}', space=sflag, size = 0x4, scoped, tag = 'scoped memory for edge_gn_block_forward.3']
    %8 = vsyncpa [#allocation3], 0
    // Predicated region
    $region2: #{edge_gn_block_forward.3} parent=1 // pred_check
      _
    $region3: #{edge_gn_block_forward.3} parent=1 // pred_check_branch
      %10 = sbr.rel (0) target = $region5
    $region4: #{edge_gn_block_forward.3} parent=1 // pred_region
      _
    $region5: #{edge_gn_block_forward.3} parent=1 // pred_fallthru
      _
    // Predicated region
    $region6: #{edge_gn_block_forward.3} parent=1 // pred_check
      _
    $region7: #{edge_gn_block_forward.3} parent=1 // pred_check_branch
      %12 = sbr.rel (0) target = $region9
    $region8: #{edge_gn_block_forward.3} parent=1 // pred_region
      _
    $region9: #{edge_gn_block_forward.3} parent=1 // pred_fallthru
      _
    // Predicated region
    $region10: #{edge_gn_block_forward.3} parent=1 // pred_check
      _
    $region11: #{edge_gn_block_forward.3} parent=1 // pred_check_branch
      %14 = sbr.rel (0) target = $region13
    $region12: #{edge_gn_block_forward.3} parent=1 // pred_region
      _
    $region13: #{edge_gn_block_forward.3} parent=1 // pred_fallthru
      _
    %v16 = vld [vmem:[%s0] sm:$0xf]
    %v17 = vld [vmem:[%s0 + $0x4] sm:$0xf]
    %v18 = vld [vmem:[%s1] sm:$0xf]
    %v19 = vld [vmem:[%s2] sm:$0x1]
    %v20 = vunpack.c.l.bf16 %v19
    %v21 = vperm.slane %v20, 0
    %v24 = vunpack.c.l.b16 %v16
    %v25 = vunpack.c.l.b16 %v17
    %v26 = vpack.c.b16 %v25, %v24
    %vm27 = vcmask 64512
    %v29 = vsel %vm27, %v26, 0
    %vm31 = vcmask 1043456
    %v33 = vsel %vm31, %v18, 0
    %35 = vmatpush.bf16.msra.mxu0 0
    %36 = vmatpush.bf16.msra.mxu0 0
    %37 = vmatpush.bf16.msra.mxu0 0
    %38 = vmatpush.bf16.msra.mxu0 0
    %39 = vmatpush.bf16.msra.mxu0 0
    %40 = vmatpush.bf16.msra.mxu0 0
    %41 = vmatpush.bf16.msra.mxu0 0
    %42 = vmatpush.bf16.msra.mxu0 %v33
    %43 = vmatmul.bf16.gmra.mxu0 %v29
    %v44 = vpop.f32.mrf.mxu0
    %v45 = vadd.f32 %v21, %v44
    %v46 = vpop.f32.mrf.mxu0
    %v47 = vadd.f32 %v21, %v46
    %48 = vdwg.mxu0
    %vm49 = vcmask 130048
    %50 = vst.msk [vmem:[#allocation2] sm:$0xff] %vm49, %v45
    %51 = vst.msk [vmem:[#allocation2 + $0x8] sm:$0xff] %vm49, %v47
    // Predicated region
    $region14: #{edge_gn_block_forward.3} parent=1 // pred_check
      _
    $region15: #{edge_gn_block_forward.3} parent=1 // pred_check_branch
      %53 = sbr.rel (0) target = $region17
    $region16: #{edge_gn_block_forward.3} parent=1 // pred_region
      %55 = vsyncadd [#allocation3], 0
      %s56 = sshll.u32 [#allocation2], 4
      %s57 = int_to_ptr.vmem [resolvable:$true] %s56
      %s58 = sshll.u32 %s3, 4
      %s59 = int_to_ptr.hbm [resolvable:$true] %s58
      %64 = dma.vmem_to_hbm [thread:$0]  %s57, 256, %s59, [#allocation3], 128, 128, 8
    $region17: #{edge_gn_block_forward.3} parent=1 // pred_fallthru
      _
    // Predicated region
    $region18: #{edge_gn_block_forward.3} parent=1 // pred_check
      _
    $region19: #{edge_gn_block_forward.3} parent=1 // pred_check_branch
      %66 = sbr.rel (0) target = $region21
    $region20: #{edge_gn_block_forward.3} parent=1 // pred_region
      %68 = dma.done [#allocation3], 256
    $region21: #{edge_gn_block_forward.3} parent=1 // pred_fallthru
      _
    %69 = vsyncpa [#allocation3], 1

</llo_original>
